<compile_context>
chip_gen: v5e
topology: v5e:2x2
jax: 0.10.0
libtpu: 0.0.40
codegen_flags: <defaults>
</compile_context>

<pallas_src>
import jax
import jax.numpy as jnp
from jax.experimental import pallas as pl
from jax.experimental.pallas import tpu as pltpu

_EPS = 1e-5
_MXU_DTYPE = jnp.bfloat16   # matmul-input dtype; f32 accumulation regardless.
                            # Set to jnp.float32 for bit-closer PyTorch fp32 parity.


def _double_conv_kernel(x_ref,                    # (N, H, W*Cin)      f32
                        w1_ref,                   # (3*W*Cin,  W*Cout) MXU dtype
                        g1_ref, bt1_ref,          # (1, Cout) f32 each
                        w2_ref,                   # (3*W*Cout, W*Cout) MXU dtype
                        g2_ref, bt2_ref,          # (1, Cout) f32 each
                        fold_ref, unfold_ref,     # (W*Cout, Cout), (Cout, W*Cout)
                        out_ref):                 # (N*H, W*Cout)
    N, H, _ = x_ref.shape
    WCout = out_ref.shape[1]
    Cout = fold_ref.shape[1]
    W = WCout // Cout
    inv_P = 1.0 / float(N * H * W)

    fold = fold_ref[...]
    unfold = unfold_ref[...]

    def taps_of(a3):
        # a3: (N, H, L) f32.  Returns (N*H, 3*L) with lane order (dy, w, c):
        # rows h-1 / h / h+1, zero rows at image boundaries (the conv's H padding).
        # Done on f32 so the sublane row-shifts never touch packed bf16 rows.
        n, h, l = a3.shape
        zrow = jnp.zeros((n, 1, l), a3.dtype)
        up = jnp.concatenate([zrow, a3[:, :h - 1, :]], axis=1)
        dn = jnp.concatenate([a3[:, 1:, :], zrow], axis=1)
        return jnp.concatenate([up, a3, dn], axis=-1).reshape(n * h, 3 * l)

    def bn_relu(acc, g_row, bt_row):
        # acc: (N*H, W*Cout) f32.  One-pass batch stats (biased var), fused
        # affine + ReLU.  Fold/unfold are one-hot matmuls; the two stats rows and
        # the two affine rows are stacked so each direction is a single MXU push.
        stats = jnp.concatenate(
            [jnp.sum(acc, axis=0, keepdims=True),
             jnp.sum(acc * acc, axis=0, keepdims=True)], axis=0)        # (2, W*Cout)
        cstats = jnp.dot(stats, fold,
                         preferred_element_type=jnp.float32)            # (2, Cout)
        mean = cstats[0:1, :] * inv_P
        var = jnp.maximum(cstats[1:2, :] * inv_P - mean * mean, 0.0)
        scale = g_row * jax.lax.rsqrt(var + _EPS)                       # (1, Cout)
        shift = bt_row - mean * scale                                   # (1, Cout)
        ss = jnp.concatenate([scale, shift], axis=0)                    # (2, Cout)
        ss_l = jnp.dot(ss, unfold,
                       preferred_element_type=jnp.float32)              # (2, W*Cout)
        return jnp.maximum(acc * ss_l[0:1, :] + ss_l[1:2, :], 0.0)

    # ---------------- conv1 (single matmul, bias absorbed by BN) + BN1 + ReLU ----
    p1 = taps_of(x_ref[...]).astype(w1_ref.dtype)                       # (N*H, 3*W*Cin)
    acc1 = jnp.dot(p1, w1_ref[...], preferred_element_type=jnp.float32)
    h1 = bn_relu(acc1, g1_ref[...], bt1_ref[...])                       # (N*H, W*Cout) f32

    # ---------------- conv2 (single matmul, bias absorbed by BN) + BN2 + ReLU ----
    p2 = taps_of(h1.reshape(N, H, WCout)).astype(w2_ref.dtype)          # (N*H, 3*W*Cout)
    acc2 = jnp.dot(p2, w2_ref[...], preferred_element_type=jnp.float32)
    out_ref[...] = bn_relu(acc2, g2_ref[...], bt2_ref[...]).astype(out_ref.dtype)


def _band_weights(w_pt, W, dtype):
    """PyTorch (Cout, Cin, 3, 3) conv weight -> block-Toeplitz (3*W*Cin, W*Cout).

    Row index order is (dy, input_w, cin); column index order is (output_w, cout).
    Width zero-padding (padding=1 along W) is encoded by omitting out-of-range taps.
    NOTE: size scales O(W^2 * Cin * Cout) -- width-tile at real UNet widths.
    """
    Cout, Cin, KH, KW = w_pt.shape
    wk = jnp.transpose(w_pt, (2, 3, 1, 0)).astype(jnp.float32)    # (3, 3, Cin, Cout)
    iw = jnp.arange(W)
    ow = jnp.arange(W)
    dx = jnp.arange(KW)
    # mask[d, i, o] = 1 iff input col i feeds output col o through tap dx=d.
    mask = (iw[None, :, None] == ow[None, None, :] + dx[:, None, None] - 1)
    mask = mask.astype(jnp.float32)                               # (3, W, W)
    wb = jnp.einsum('dio,ydck->yicok', mask, wk)                  # (3, W, Cin, W, Cout)
    return wb.reshape(3 * W * Cin, W * Cout).astype(dtype)


def prepare_double_conv_params(w1, g1, bt1, w2, g2, bt2, W):
    """Host-side parameter prep (do once; reuse across calls / chained blocks)."""
    Cout = w1.shape[0]
    wb1 = _band_weights(w1, W, _MXU_DTYPE)                        # (3*W*Cin,  W*Cout)
    wb2 = _band_weights(w2, W, _MXU_DTYPE)                        # (3*W*Cout, W*Cout)
    g1r = g1.reshape(1, Cout).astype(jnp.float32)
    bt1r = bt1.reshape(1, Cout).astype(jnp.float32)
    g2r = g2.reshape(1, Cout).astype(jnp.float32)
    bt2r = bt2.reshape(1, Cout).astype(jnp.float32)
    # One-hot fold/unfold matrices for per-channel BN stats in the (w, c) lane layout.
    fold = jnp.tile(jnp.eye(Cout, dtype=jnp.float32), (W, 1))     # (W*Cout, Cout)
    unfold = fold.T                                               # (Cout, W*Cout)
    return (wb1, g1r, bt1r, wb2, g2r, bt2r, fold, unfold)


def double_conv_slab(x_slab, params, *, out_dtype=jnp.float32):
    """Lane-dense entry point for chaining DoubleConv blocks.

    x_slab: (N, H, W*Cin) f32 in NHWC lane order (w, c).
    Returns an (N*H, W*Cout) slab (f32 by default; pass out_dtype=jnp.bfloat16 to
    halve writeback when the consumer tolerates bf16).
    """
    wb1, g1r, bt1r, wb2, g2r, bt2r, fold, unfold = params
    N, H, _ = x_slab.shape
    WCout = wb1.shape[1]
    vmem = pl.BlockSpec(memory_space=pltpu.MemorySpace.VMEM)
    return pl.pallas_call(
        _double_conv_kernel,
        out_shape=jax.ShapeDtypeStruct((N * H, WCout), out_dtype),
        in_specs=[vmem] * 9,
        out_specs=vmem,
    )(x_slab, wb1, g1r, bt1r, wb2, g2r, bt2r, fold, unfold)


def double_conv(x_nchw, w1, b1, g1, bt1, w2, b2, g2, bt2):
    """Module-level wrapper: x_nchw (N, Cin, H, W) -> (N, Cout, H, W), training-mode
    forward of DoubleConv.  Conv biases b1/b2 are accepted for interface parity but
    are mathematically absorbed by the BatchNorm mean subtraction, so they are never
    sent to the device kernel.
    """
    del b1, b2  # exactly absorbed by training-mode BatchNorm (verified in __main__)
    N, Cin, H, W = x_nchw.shape
    Cout = w1.shape[0]

    params = prepare_double_conv_params(w1, g1, bt1, w2, g2, bt2, W)

    # NCHW -> lane-dense (N, H, W*Cin) f32 slab (taps are built on f32 in-kernel).
    x = jnp.transpose(x_nchw, (0, 2, 3, 1)).reshape(N, H, W * Cin).astype(jnp.float32)

    out = double_conv_slab(x, params, out_dtype=jnp.float32)

    # (N*H, W*Cout) -> (N, H, W, Cout) -> NCHW  (skip this when chaining blocks).
    return jnp.transpose(out.reshape(N, H, W, Cout), (0, 3, 1, 2))


def _reference(x, w1, b1, g1, bt1, w2, b2, g2, bt2):
    """Pure-JAX NCHW reference: Conv(+bias) -> BN(training) -> ReLU, twice."""
    def block(x, w, b, g, bt):
        y = jax.lax.conv_general_dilated(
            x, w, window_strides=(1, 1), padding='SAME',
            dimension_numbers=('NCHW', 'OIHW', 'NCHW')) + b[None, :, None, None]
        mean = y.mean(axis=(0, 2, 3), keepdims=True)
        var = y.var(axis=(0, 2, 3), keepdims=True)        # biased, as BN training uses
        yhat = (y - mean) * jax.lax.rsqrt(var + _EPS)
        return jnp.maximum(yhat * g[None, :, None, None] + bt[None, :, None, None], 0.0)
    return block(block(x, w1, b1, g1, bt1), w2, b2, g2, bt2)


if __name__ == "__main__":
    # Small shapes consistent with DoubleConv(in_channels=4, out_channels=8).
    N, Cin, Cout, H, W = 2, 4, 8, 16, 16

    key = jax.random.PRNGKey(0)
    kx, kw1, kb1, kw2, kb2 = jax.random.split(key, 5)

    x = jax.random.normal(kx, (N, Cin, H, W), jnp.float32)

    # Conv2d / BatchNorm2d parameter shapes (biases included to exercise the
    # "bias is absorbed by training-mode BN" equivalence).
    w1 = 0.1 * jax.random.normal(kw1, (Cout, Cin, 3, 3), jnp.float32)
    b1 = 0.1 * jax.random.normal(kb1, (Cout,), jnp.float32)
    w2 = 0.1 * jax.random.normal(kw2, (Cout, Cout, 3, 3), jnp.float32)
    b2 = 0.1 * jax.random.normal(kb2, (Cout,), jnp.float32)
    # BatchNorm affine params at PyTorch defaults (weight=1, bias=0).
    g1, bt1 = jnp.ones((Cout,), jnp.float32), jnp.zeros((Cout,), jnp.float32)
    g2, bt2 = jnp.ones((Cout,), jnp.float32), jnp.zeros((Cout,), jnp.float32)

    out = double_conv(x, w1, b1, g1, bt1, w2, b2, g2, bt2)
    out = jax.block_until_ready(out)
    assert out.shape == (N, Cout, H, W)

    # Correctness vs. a pure-JAX fp32 reference (tolerance sized for bf16 MXU inputs).
    ref = _reference(x, w1, b1, g1, bt1, w2, b2, g2, bt2)
    err = float(jnp.max(jnp.abs(out - ref)))
    assert err < 0.15, f"max abs err {err}"

    # TODO(synk): BatchNorm2d running_mean/running_var buffer updates are not
    # emitted (forward output matches training mode; running stats unused here).
    print("KERNEL_OK")
</pallas_src>

<mosaic_0001>
module attributes {stable_mosaic.version = 11 : i64} {
  func.func @_double_conv_kernel(%arg0: memref<2x16x64xf32, #tpu.memory_space<vmem>>, %arg1: memref<192x128xbf16, #tpu.memory_space<vmem>>, %arg2: memref<1x8xf32, #tpu.memory_space<vmem>>, %arg3: memref<1x8xf32, #tpu.memory_space<vmem>>, %arg4: memref<384x128xbf16, #tpu.memory_space<vmem>>, %arg5: memref<1x8xf32, #tpu.memory_space<vmem>>, %arg6: memref<1x8xf32, #tpu.memory_space<vmem>>, %arg7: memref<128x8xf32, #tpu.memory_space<vmem>>, %arg8: memref<8x128xf32, #tpu.memory_space<vmem>>, %arg9: memref<32x128xf32, #tpu.memory_space<vmem>>) attributes {dimension_semantics = [], scalar_prefetch = 0 : i64, scratch_operands = 0 : i64, tpu.core_type = #tpu.core_type<tc>} {
    %c0 = arith.constant 0 : index
    %c0_0 = arith.constant 0 : index
    %0 = vector.load %arg7[%c0, %c0_0] : memref<128x8xf32, #tpu.memory_space<vmem>>, vector<128x8xf32>
    %c0_1 = arith.constant 0 : index
    %c0_2 = arith.constant 0 : index
    %1 = vector.load %arg8[%c0_1, %c0_2] : memref<8x128xf32, #tpu.memory_space<vmem>>, vector<8x128xf32>
    %c0_3 = arith.constant 0 : index
    %c0_4 = arith.constant 0 : index
    %c0_5 = arith.constant 0 : index
    %2 = vector.load %arg0[%c0_3, %c0_4, %c0_5] : memref<2x16x64xf32, #tpu.memory_space<vmem>>, vector<2x16x64xf32>
    %cst = arith.constant 0.000000e+00 : f32
    %3 = vector.broadcast %cst : f32 to vector<2x1x64xf32>
    %4 = vector.extract_strided_slice %2 {offsets = [0, 0, 0], sizes = [2, 15, 64], strides = [1, 1, 1]} : vector<2x16x64xf32> to vector<2x15x64xf32>
    %5 = tpu.concatenate %3, %4 in 1 : vector<2x1x64xf32>, vector<2x15x64xf32> -> vector<2x16x64xf32>
    %6 = vector.extract_strided_slice %2 {offsets = [0, 1, 0], sizes = [2, 15, 64], strides = [1, 1, 1]} : vector<2x16x64xf32> to vector<2x15x64xf32>
    %7 = tpu.concatenate %6, %3 in 1 : vector<2x15x64xf32>, vector<2x1x64xf32> -> vector<2x16x64xf32>
    %8 = tpu.concatenate %5, %2, %7 in 2 : vector<2x16x64xf32>, vector<2x16x64xf32>, vector<2x16x64xf32> -> vector<2x16x192xf32>
    %9 = vector.shape_cast %8 : vector<2x16x192xf32> to vector<32x192xf32>
    %10 = arith.truncf %9 : vector<32x192xf32> to vector<32x192xbf16>
    %c0_6 = arith.constant 0 : index
    %c0_7 = arith.constant 0 : index
    %11 = vector.load %arg1[%c0_6, %c0_7] : memref<192x128xbf16, #tpu.memory_space<vmem>>, vector<192x128xbf16>
    %cst_8 = arith.constant dense<0.000000e+00> : vector<32x128xf32>
    %12 = tpu.matmul %10, %11, %cst_8 {dimension_numbers = #tpu.dot_dimension_numbers<[1], [0], [0], [1], [0, 0, 1, 1], [], []>} : vector<32x192xbf16>, vector<192x128xbf16>, vector<32x128xf32> -> vector<32x128xf32>
    %c0_9 = arith.constant 0 : index
    %c0_10 = arith.constant 0 : index
    %13 = vector.load %arg2[%c0_9, %c0_10] : memref<1x8xf32, #tpu.memory_space<vmem>>, vector<1x8xf32>
    %c0_11 = arith.constant 0 : index
    %c0_12 = arith.constant 0 : index
    %14 = vector.load %arg3[%c0_11, %c0_12] : memref<1x8xf32, #tpu.memory_space<vmem>>, vector<1x8xf32>
    %cst_13 = arith.constant dense<0.000000e+00> : vector<128xf32>
    %15 = vector.multi_reduction <add>, %12, %cst_13 [0] : vector<32x128xf32> to vector<128xf32>
    %16 = vector.shape_cast %15 : vector<128xf32> to vector<1x128xf32>
    %17 = arith.mulf %12, %12 : vector<32x128xf32>
    %cst_14 = arith.constant dense<0.000000e+00> : vector<128xf32>
    %18 = vector.multi_reduction <add>, %17, %cst_14 [0] : vector<32x128xf32> to vector<128xf32>
    %19 = vector.shape_cast %18 : vector<128xf32> to vector<1x128xf32>
    %20 = tpu.concatenate %16, %19 in 0 : vector<1x128xf32>, vector<1x128xf32> -> vector<2x128xf32>
    %cst_15 = arith.constant dense<0.000000e+00> : vector<2x8xf32>
    %21 = tpu.matmul %20, %0, %cst_15 {dimension_numbers = #tpu.dot_dimension_numbers<[1], [0], [0], [1], [0, 0, 1, 1], [], []>} : vector<2x128xf32>, vector<128x8xf32>, vector<2x8xf32> -> vector<2x8xf32>
    %22 = vector.extract_strided_slice %21 {offsets = [0, 0], sizes = [1, 8], strides = [1, 1]} : vector<2x8xf32> to vector<1x8xf32>
    %cst_16 = arith.constant 0.001953125 : f32
    %23 = vector.broadcast %cst_16 : f32 to vector<1x8xf32>
    %24 = arith.mulf %22, %23 : vector<1x8xf32>
    %25 = vector.extract_strided_slice %21 {offsets = [1, 0], sizes = [1, 8], strides = [1, 1]} : vector<2x8xf32> to vector<1x8xf32>
    %cst_17 = arith.constant 0.001953125 : f32
    %26 = vector.broadcast %cst_17 : f32 to vector<1x8xf32>
    %27 = arith.mulf %25, %26 : vector<1x8xf32>
    %28 = arith.mulf %24, %24 : vector<1x8xf32>
    %29 = arith.subf %27, %28 : vector<1x8xf32>
    %cst_18 = arith.constant 0.000000e+00 : f32
    %30 = vector.broadcast %cst_18 : f32 to vector<1x8xf32>
    %31 = arith.maximumf %29, %30 : vector<1x8xf32>
    %cst_19 = arith.constant 9.99999974E-6 : f32
    %32 = vector.broadcast %cst_19 : f32 to vector<1x8xf32>
    %33 = arith.addf %31, %32 : vector<1x8xf32>
    %34 = math.rsqrt %33 : vector<1x8xf32>
    %35 = arith.mulf %13, %34 : vector<1x8xf32>
    %36 = arith.mulf %24, %35 : vector<1x8xf32>
    %37 = arith.subf %14, %36 : vector<1x8xf32>
    %38 = tpu.concatenate %35, %37 in 0 : vector<1x8xf32>, vector<1x8xf32> -> vector<2x8xf32>
    %cst_20 = arith.constant dense<0.000000e+00> : vector<2x128xf32>
    %39 = tpu.matmul %38, %1, %cst_20 {dimension_numbers = #tpu.dot_dimension_numbers<[1], [0], [0], [1], [0, 0, 1, 1], [], []>} : vector<2x8xf32>, vector<8x128xf32>, vector<2x128xf32> -> vector<2x128xf32>
    %40 = vector.extract_strided_slice %39 {offsets = [0, 0], sizes = [1, 128], strides = [1, 1]} : vector<2x128xf32> to vector<1x128xf32>
    %41 = vector.broadcast %40 : vector<1x128xf32> to vector<32x128xf32>
    %42 = arith.mulf %12, %41 : vector<32x128xf32>
    %43 = vector.extract_strided_slice %39 {offsets = [1, 0], sizes = [1, 128], strides = [1, 1]} : vector<2x128xf32> to vector<1x128xf32>
    %44 = vector.broadcast %43 : vector<1x128xf32> to vector<32x128xf32>
    %45 = arith.addf %42, %44 : vector<32x128xf32>
    %cst_21 = arith.constant 0.000000e+00 : f32
    %46 = vector.broadcast %cst_21 : f32 to vector<32x128xf32>
    %47 = arith.maximumf %45, %46 : vector<32x128xf32>
    %48 = vector.shape_cast %47 : vector<32x128xf32> to vector<2x16x128xf32>
    %cst_22 = arith.constant 0.000000e+00 : f32
    %49 = vector.broadcast %cst_22 : f32 to vector<2x1x128xf32>
    %50 = vector.extract_strided_slice %48 {offsets = [0, 0, 0], sizes = [2, 15, 128], strides = [1, 1, 1]} : vector<2x16x128xf32> to vector<2x15x128xf32>
    %51 = tpu.concatenate %49, %50 in 1 : vector<2x1x128xf32>, vector<2x15x128xf32> -> vector<2x16x128xf32>
    %52 = vector.extract_strided_slice %48 {offsets = [0, 1, 0], sizes = [2, 15, 128], strides = [1, 1, 1]} : vector<2x16x128xf32> to vector<2x15x128xf32>
    %53 = tpu.concatenate %52, %49 in 1 : vector<2x15x128xf32>, vector<2x1x128xf32> -> vector<2x16x128xf32>
    %54 = tpu.concatenate %51, %48, %53 in 2 : vector<2x16x128xf32>, vector<2x16x128xf32>, vector<2x16x128xf32> -> vector<2x16x384xf32>
    %55 = vector.shape_cast %54 : vector<2x16x384xf32> to vector<32x384xf32>
    %56 = arith.truncf %55 : vector<32x384xf32> to vector<32x384xbf16>
    %c0_23 = arith.constant 0 : index
    %c0_24 = arith.constant 0 : index
    %57 = vector.load %arg4[%c0_23, %c0_24] : memref<384x128xbf16, #tpu.memory_space<vmem>>, vector<384x128xbf16>
    %cst_25 = arith.constant dense<0.000000e+00> : vector<32x128xf32>
    %58 = tpu.matmul %56, %57, %cst_25 {dimension_numbers = #tpu.dot_dimension_numbers<[1], [0], [0], [1], [0, 0, 1, 1], [], []>} : vector<32x384xbf16>, vector<384x128xbf16>, vector<32x128xf32> -> vector<32x128xf32>
    %c0_26 = arith.constant 0 : index
    %c0_27 = arith.constant 0 : index
    %59 = vector.load %arg5[%c0_26, %c0_27] : memref<1x8xf32, #tpu.memory_space<vmem>>, vector<1x8xf32>
    %c0_28 = arith.constant 0 : index
    %c0_29 = arith.constant 0 : index
    %60 = vector.load %arg6[%c0_28, %c0_29] : memref<1x8xf32, #tpu.memory_space<vmem>>, vector<1x8xf32>
    %cst_30 = arith.constant dense<0.000000e+00> : vector<128xf32>
    %61 = vector.multi_reduction <add>, %58, %cst_30 [0] : vector<32x128xf32> to vector<128xf32>
    %62 = vector.shape_cast %61 : vector<128xf32> to vector<1x128xf32>
    %63 = arith.mulf %58, %58 : vector<32x128xf32>
    %cst_31 = arith.constant dense<0.000000e+00> : vector<128xf32>
    %64 = vector.multi_reduction <add>, %63, %cst_31 [0] : vector<32x128xf32> to vector<128xf32>
    %65 = vector.shape_cast %64 : vector<128xf32> to vector<1x128xf32>
    %66 = tpu.concatenate %62, %65 in 0 : vector<1x128xf32>, vector<1x128xf32> -> vector<2x128xf32>
    %cst_32 = arith.constant dense<0.000000e+00> : vector<2x8xf32>
    %67 = tpu.matmul %66, %0, %cst_32 {dimension_numbers = #tpu.dot_dimension_numbers<[1], [0], [0], [1], [0, 0, 1, 1], [], []>} : vector<2x128xf32>, vector<128x8xf32>, vector<2x8xf32> -> vector<2x8xf32>
    %68 = vector.extract_strided_slice %67 {offsets = [0, 0], sizes = [1, 8], strides = [1, 1]} : vector<2x8xf32> to vector<1x8xf32>
    %cst_33 = arith.constant 0.001953125 : f32
    %69 = vector.broadcast %cst_33 : f32 to vector<1x8xf32>
    %70 = arith.mulf %68, %69 : vector<1x8xf32>
    %71 = vector.extract_strided_slice %67 {offsets = [1, 0], sizes = [1, 8], strides = [1, 1]} : vector<2x8xf32> to vector<1x8xf32>
    %cst_34 = arith.constant 0.001953125 : f32
    %72 = vector.broadcast %cst_34 : f32 to vector<1x8xf32>
    %73 = arith.mulf %71, %72 : vector<1x8xf32>
    %74 = arith.mulf %70, %70 : vector<1x8xf32>
    %75 = arith.subf %73, %74 : vector<1x8xf32>
    %cst_35 = arith.constant 0.000000e+00 : f32
    %76 = vector.broadcast %cst_35 : f32 to vector<1x8xf32>
    %77 = arith.maximumf %75, %76 : vector<1x8xf32>
    %cst_36 = arith.constant 9.99999974E-6 : f32
    %78 = vector.broadcast %cst_36 : f32 to vector<1x8xf32>
    %79 = arith.addf %77, %78 : vector<1x8xf32>
    %80 = math.rsqrt %79 : vector<1x8xf32>
    %81 = arith.mulf %59, %80 : vector<1x8xf32>
    %82 = arith.mulf %70, %81 : vector<1x8xf32>
    %83 = arith.subf %60, %82 : vector<1x8xf32>
    %84 = tpu.concatenate %81, %83 in 0 : vector<1x8xf32>, vector<1x8xf32> -> vector<2x8xf32>
    %cst_37 = arith.constant dense<0.000000e+00> : vector<2x128xf32>
    %85 = tpu.matmul %84, %1, %cst_37 {dimension_numbers = #tpu.dot_dimension_numbers<[1], [0], [0], [1], [0, 0, 1, 1], [], []>} : vector<2x8xf32>, vector<8x128xf32>, vector<2x128xf32> -> vector<2x128xf32>
    %86 = vector.extract_strided_slice %85 {offsets = [0, 0], sizes = [1, 128], strides = [1, 1]} : vector<2x128xf32> to vector<1x128xf32>
    %87 = vector.broadcast %86 : vector<1x128xf32> to vector<32x128xf32>
    %88 = arith.mulf %58, %87 : vector<32x128xf32>
    %89 = vector.extract_strided_slice %85 {offsets = [1, 0], sizes = [1, 128], strides = [1, 1]} : vector<2x128xf32> to vector<1x128xf32>
    %90 = vector.broadcast %89 : vector<1x128xf32> to vector<32x128xf32>
    %91 = arith.addf %88, %90 : vector<32x128xf32>
    %cst_38 = arith.constant 0.000000e+00 : f32
    %92 = vector.broadcast %cst_38 : f32 to vector<32x128xf32>
    %93 = arith.maximumf %91, %92 : vector<32x128xf32>
    %c0_39 = arith.constant 0 : index
    %c0_40 = arith.constant 0 : index
    %94 = vector.load %arg9[%c0_39, %c0_40] : memref<32x128xf32, #tpu.memory_space<vmem>>, vector<32x128xf32>
    tpu.vector_store %arg9[%c0_39, %c0_40], %93 {strides = array<i32>} : memref<32x128xf32, #tpu.memory_space<vmem>>, vector<32x128xf32>,
    return
  }
}

</mosaic_0001>

<llo_original>
// kernel: tpu_custom_call.1
$region0: #{tpu_custom_call.1}
  #allocation0 [shape = 'u32[]', space=smem, size = 0x4, offset = 0x4, fixed_abs, tag = 'smem constant byte address 0x4 - core index']
  #allocation1 [shape = 'u32[72,128]{1,0:T(1,128)}', space=vmem, size = 0x9000, scoped, tag = 'internal scratch']
  %s0 = inlined_call_operand.vmem [shape: f32[2,16,64], index: 0, kind: input, shape index: {}]
  %s1 = inlined_call_operand.vmem [shape: bf16[192,128], index: 1, kind: input, shape index: {}]
  %s2 = inlined_call_operand.vmem [shape: f32[1,8], index: 2, kind: input, shape index: {}]
  %s3 = inlined_call_operand.hbm [shape: f32[1,8], index: 3, kind: input, shape index: {}]
  %s4 = inlined_call_operand.hbm [shape: bf16[384,128], index: 4, kind: input, shape index: {}]
  %s5 = inlined_call_operand.vmem [shape: f32[1,8], index: 5, kind: input, shape index: {}]
  %s6 = inlined_call_operand.vmem [shape: f32[1,8], index: 6, kind: input, shape index: {}]
  %s7 = inlined_call_operand.vmem [shape: f32[128,8], index: 7, kind: input, shape index: {}]
  %s8 = inlined_call_operand.vmem [shape: f32[8,128], index: 8, kind: input, shape index: {}]
  %s9 = inlined_call_operand.hbm [shape: f32[32,128], index: 9, kind: output, shape index: {}]
  %s10 = sld [smem:[#allocation0]]
  $region54: #{tpu_custom_call.1} parent=0
    _
  %s12 = ssub.s32 1, %s10
  %s13 = scalar_select 0, %s12, %s10
  $region1: #{tpu_custom_call.1} parent=0
    #allocation2 [shape = 'u8[512]{0}', space=vmem, size = 0x400, scoped, tag = 'input window, operand 3, single buffered']
    #allocation3 [shape = 's32[1]{0}', space=sflag, size = 0x4, scoped, tag = 'scoped memory for tpu_custom_call.1']
    #allocation4 [shape = 's32[1]{0}', space=sflag, size = 0x4, scoped, tag = 'scoped memory for tpu_custom_call.1']
    #allocation5 [shape = 'u8[98304]{0}', space=vmem, size = 0x18000, scoped, tag = 'input window, operand 4, single buffered']
    #allocation6 [shape = 's32[1]{0}', space=sflag, size = 0x4, scoped, tag = 'scoped memory for tpu_custom_call.1']
    #allocation7 [shape = 'u8[16384]{0}', space=vmem, size = 0x4000, scoped, tag = 'output window, operand 0, single buffered']
    %14 = vsyncpa [#allocation3], 0
    %15 = vsyncpa [#allocation6], 0
    %16 = vsyncpa [#allocation4], 0
    // Predicated region
    $region2: #{tpu_custom_call.1} parent=1 // pred_check
      _
    $region3: #{tpu_custom_call.1} parent=1 // pred_check_branch
      %18 = sbr.rel (0) target = $region5
    $region4: #{tpu_custom_call.1} parent=1 // pred_region
      _
    $region5: #{tpu_custom_call.1} parent=1 // pred_fallthru
      _
    // Predicated region
    $region6: #{tpu_custom_call.1} parent=1 // pred_check
      _
    $region7: #{tpu_custom_call.1} parent=1 // pred_check_branch
      %20 = sbr.rel (0) target = $region9
    $region8: #{tpu_custom_call.1} parent=1 // pred_region
      _
    $region9: #{tpu_custom_call.1} parent=1 // pred_fallthru
      _
    // Predicated region
    $region10: #{tpu_custom_call.1} parent=1 // pred_check
      _
    $region11: #{tpu_custom_call.1} parent=1 // pred_check_branch
      %22 = sbr.rel (0) target = $region13
    $region12: #{tpu_custom_call.1} parent=1 // pred_region
      _
    $region13: #{tpu_custom_call.1} parent=1 // pred_fallthru
      _
    // Predicated region
    $region14: #{tpu_custom_call.1} parent=1 // pred_check
      _
    $region15: #{tpu_custom_call.1} parent=1 // pred_check_branch
      %24 = sbr.rel (0) target = $region17
    $region16: #{tpu_custom_call.1} parent=1 // pred_region
      %26 = vsyncadd [#allocation3], 0
      %s28 = sshll.u32 %s3, 4
      %s29 = int_to_ptr.hbm [resolvable:$true] %s28
      %s30 = sshll.u32 [#allocation2], 4
      %s31 = int_to_ptr.vmem [resolvable:$true] %s30
      %33 = dma.hbm_to_vmem [thread:$0]  %s29, 16, %s31, [#allocation3]
    $region17: #{tpu_custom_call.1} parent=1 // pred_fallthru
      _
    // Predicated region
    $region18: #{tpu_custom_call.1} parent=1 // pred_check
      _
    $region19: #{tpu_custom_call.1} parent=1 // pred_check_branch
      %35 = sbr.rel (0) target = $region21
    $region20: #{tpu_custom_call.1} parent=1 // pred_region
      %37 = vsyncadd [#allocation6], 0
      %s38 = sshll.u32 %s4, 4
      %s39 = int_to_ptr.hbm [resolvable:$true] %s38
      %s40 = sshll.u32 [#allocation5], 4
      %s41 = int_to_ptr.vmem [resolvable:$true] %s40
      %46 = dma.hbm_to_vmem [thread:$0]  %s39, 3072, %s41, [#allocation6], 64, 64, 4
    $region21: #{tpu_custom_call.1} parent=1 // pred_fallthru
      _
    // Predicated region
    $region22: #{tpu_custom_call.1} parent=1 // pred_check
      _
    $region23: #{tpu_custom_call.1} parent=1 // pred_check_branch
      %48 = sbr.rel (0) target = $region25
    $region24: #{tpu_custom_call.1} parent=1 // pred_region
      _
    $region25: #{tpu_custom_call.1} parent=1 // pred_fallthru
      _
    // Predicated region
    $region26: #{tpu_custom_call.1} parent=1 // pred_check
      _
    $region27: #{tpu_custom_call.1} parent=1 // pred_check_branch
      %50 = sbr.rel (0) target = $region29
    $region28: #{tpu_custom_call.1} parent=1 // pred_region
      _
    $region29: #{tpu_custom_call.1} parent=1 // pred_fallthru
      _
    // Predicated region
    $region30: #{tpu_custom_call.1} parent=1 // pred_check
      _
    $region31: #{tpu_custom_call.1} parent=1 // pred_check_branch
      %52 = sbr.rel (0) target = $region33
    $region32: #{tpu_custom_call.1} parent=1 // pred_region
      _
    $region33: #{tpu_custom_call.1} parent=1 // pred_fallthru
      _
    // Predicated region
    $region34: #{tpu_custom_call.1} parent=1 // pred_check
      _
    $region35: #{tpu_custom_call.1} parent=1 // pred_check_branch
      %54 = sbr.rel (0) target = $region37
    $region36: #{tpu_custom_call.1} parent=1 // pred_region
      _
    $region37: #{tpu_custom_call.1} parent=1 // pred_fallthru
      _
    // Predicated region
    $region38: #{tpu_custom_call.1} parent=1 // pred_check
      _
    $region39: #{tpu_custom_call.1} parent=1 // pred_check_branch
      %56 = sbr.rel (0) target = $region41
    $region40: #{tpu_custom_call.1} parent=1 // pred_region
      %58 = dma.done [#allocation3], 16
    $region41: #{tpu_custom_call.1} parent=1 // pred_fallthru
      _
    // Predicated region
    $region42: #{tpu_custom_call.1} parent=1 // pred_check
      _
    $region43: #{tpu_custom_call.1} parent=1 // pred_check_branch
      %60 = sbr.rel (0) target = $region45
    $region44: #{tpu_custom_call.1} parent=1 // pred_region
      %62 = dma.done [#allocation6], 3072
    $region45: #{tpu_custom_call.1} parent=1 // pred_fallthru
      _
    %v64 = vld [vmem:[%s7] sm:$0xff]
    %v65 = vld [vmem:[%s7 + $0x8] sm:$0xff]
    %v66 = vld [vmem:[%s7 + $0x10] sm:$0xff]
    %v67 = vld [vmem:[%s7 + $0x18] sm:$0xff]
    %v68 = vld [vmem:[%s7 + $0x20] sm:$0xff]
    %v69 = vld [vmem:[%s7 + $0x28] sm:$0xff]
    %v70 = vld [vmem:[%s7 + $0x30] sm:$0xff]
    %v71 = vld [vmem:[%s7 + $0x38] sm:$0xff]
    %v72 = vld [vmem:[%s7 + $0x40] sm:$0xff]
    %v73 = vld [vmem:[%s7 + $0x48] sm:$0xff]
    %v74 = vld [vmem:[%s7 + $0x50] sm:$0xff]
    %v75 = vld [vmem:[%s7 + $0x58] sm:$0xff]
    %v76 = vld [vmem:[%s7 + $0x60] sm:$0xff]
    %v77 = vld [vmem:[%s7 + $0x68] sm:$0xff]
    %v78 = vld [vmem:[%s7 + $0x70] sm:$0xff]
    %v79 = vld [vmem:[%s7 + $0x78] sm:$0xff]
    %v80 = vld [vmem:[%s8] sm:$0xff]
    %v81 = vld [vmem:[%s0] sm:$0xff]
    %v82 = vld [vmem:[%s0 + $0x8] sm:$0xff]
    %v83 = vld [vmem:[%s0 + $0x10] sm:$0xff]
    %v84 = vld [vmem:[%s0 + $0x18] sm:$0xff]
    %vm89 = vcmask 1040384
    %v90 = vrot.slane %v81, 7
    %v91 = vrot.slane %v82, 7
    %v92 = vsel %vm89, %v90, %v91
    %v93 = vrot.slane %v83, 7
    %v94 = vrot.slane %v84, 7
    %v95 = vsel %vm89, %v93, %v94
    %v100 = vsel %vm89, 0.0, %v90
    %v101 = vsel %vm89, 0.0, %v93
    %vm102 = vcmask 1046528
    %v103 = vrot.slane %v81, 1
    %v104 = vrot.slane %v82, 1
    %v105 = vsel %vm102, %v103, %v104
    %v106 = vrot.slane %v83, 1
    %v107 = vrot.slane %v84, 1
    %v108 = vsel %vm102, %v106, %v107
    %v113 = vsel %vm102, %v104, 0.0
    %v114 = vsel %vm102, %v107, 0.0
    %115 = vrot.lane.b32.xlu0 %v81, 64
    %v116 = vpop.permute.xlu0 %115
    %117 = vrot.lane.b32.xlu0 %v82, 64
    %v118 = vpop.permute.xlu0 %117
    %119 = vrot.lane.b32.xlu0 %v83, 64
    %v120 = vpop.permute.xlu0 %119
    %121 = vrot.lane.b32.xlu0 %v84, 64
    %v122 = vpop.permute.xlu0 %121
    %vm127 = vcmask 523264
    %v128 = vsel %vm127, %v100, %v116
    %v129 = vsel %vm127, %v92, %v118
    %v130 = vsel %vm127, %v101, %v120
    %v131 = vsel %vm127, %v95, %v122
    %v132 = vpack.c.bf16 %v129, %v128
    %v133 = vpack.c.bf16 %v113, %v105
    %v134 = vpack.c.bf16 %v131, %v130
    %v135 = vpack.c.bf16 %v114, %v108
    %v136 = vld [vmem:[%s1] sm:$0xf]
    %v137 = vld [vmem:[%s1 + $0x4] sm:$0xf]
    %v138 = vld [vmem:[%s1 + $0x8] sm:$0xf]
    %v139 = vld [vmem:[%s1 + $0xc] sm:$0xf]
    %v140 = vld [vmem:[%s1 + $0x10] sm:$0xf]
    %v141 = vld [vmem:[%s1 + $0x14] sm:$0xf]
    %v142 = vld [vmem:[%s1 + $0x18] sm:$0xf]
    %v143 = vld [vmem:[%s1 + $0x1c] sm:$0xf]
    %v144 = vld [vmem:[%s1 + $0x20] sm:$0xf]
    %v145 = vld [vmem:[%s1 + $0x24] sm:$0xf]
    %v146 = vld [vmem:[%s1 + $0x28] sm:$0xf]
    %v147 = vld [vmem:[%s1 + $0x2c] sm:$0xf]
    %v148 = vld [vmem:[%s1 + $0x30] sm:$0xf]
    %v149 = vld [vmem:[%s1 + $0x34] sm:$0xf]
    %v150 = vld [vmem:[%s1 + $0x38] sm:$0xf]
    %v151 = vld [vmem:[%s1 + $0x3c] sm:$0xf]
    %v152 = vld [vmem:[%s1 + $0x40] sm:$0xf]
    %v153 = vld [vmem:[%s1 + $0x44] sm:$0xf]
    %v154 = vld [vmem:[%s1 + $0x48] sm:$0xf]
    %v155 = vld [vmem:[%s1 + $0x4c] sm:$0xf]
    %v156 = vld [vmem:[%s1 + $0x50] sm:$0xf]
    %v157 = vld [vmem:[%s1 + $0x54] sm:$0xf]
    %v158 = vld [vmem:[%s1 + $0x58] sm:$0xf]
    %v159 = vld [vmem:[%s1 + $0x5c] sm:$0xf]
    %v184 = vunpack.c.l.b16 %v136
    %v185 = vunpack.c.l.b16 %v137
    %v186 = vunpack.c.l.b16 %v138
    %v187 = vunpack.c.l.b16 %v139
    %v188 = vunpack.c.l.b16 %v140
    %v189 = vunpack.c.l.b16 %v141
    %v190 = vunpack.c.l.b16 %v142
    %v191 = vunpack.c.l.b16 %v143
    %v192 = vunpack.c.l.b16 %v144
    %v193 = vunpack.c.l.b16 %v145
    %v194 = vunpack.c.l.b16 %v146
    %v195 = vunpack.c.l.b16 %v147
    %v196 = vunpack.c.l.b16 %v148
    %v197 = vunpack.c.l.b16 %v149
    %v198 = vunpack.c.l.b16 %v150
    %v199 = vunpack.c.l.b16 %v151
    %v200 = vunpack.c.l.b16 %v152
    %v201 = vunpack.c.l.b16 %v153
    %v202 = vunpack.c.l.b16 %v154
    %v203 = vunpack.c.l.b16 %v155
    %v204 = vunpack.c.l.b16 %v156
    %v205 = vunpack.c.l.b16 %v157
    %v206 = vunpack.c.l.b16 %v158
    %v207 = vunpack.c.l.b16 %v159
    %v208 = vpack.c.b16 %v185, %v184
    %v209 = vpack.c.b16 %v187, %v186
    %v210 = vpack.c.b16 %v189, %v188
    %v211 = vpack.c.b16 %v191, %v190
    %v212 = vpack.c.b16 %v193, %v192
    %v213 = vpack.c.b16 %v195, %v194
    %v214 = vpack.c.b16 %v197, %v196
    %v215 = vpack.c.b16 %v199, %v198
    %v216 = vpack.c.b16 %v201, %v200
    %v217 = vpack.c.b16 %v203, %v202
    %v218 = vpack.c.b16 %v205, %v204
    %v219 = vpack.c.b16 %v207, %v206
    %v233 = vsel %vm127, %v133, 0
    %v236 = vsel %vm127, %v135, 0
    %238 = vmatpush.bf16.msra.mxu0 %v215
    %239 = vmatpush.bf16.msra.mxu0 %v214
    %240 = vmatpush.bf16.msra.mxu0 %v213
    %241 = vmatpush.bf16.msra.mxu0 %v212
    %242 = vmatpush.bf16.msra.mxu0 %v211
    %243 = vmatpush.bf16.msra.mxu0 %v210
    %244 = vmatpush.bf16.msra.mxu0 %v209
    %245 = vmatpush.bf16.msra.mxu0 %v208
    %246 = vmatmul.bf16.gmra.mxu0 %v132
    %v247 = vpop.f32.mrf.mxu0
    %v248 = vadd.f32 0.0, %v247
    %v249 = vpop.f32.mrf.mxu0
    %v250 = vadd.f32 0.0, %v249
    %251 = vmatmul.bf16.gmra.mxu0 %v134
    %v252 = vpop.f32.mrf.mxu0
    %v253 = vadd.f32 0.0, %v252
    %v254 = vpop.f32.mrf.mxu0
    %v255 = vadd.f32 0.0, %v254
    %256 = vdwg.mxu0
    %257 = vmatpush.bf16.msra.mxu0 0
    %258 = vmatpush.bf16.msra.mxu0 0
    %259 = vmatpush.bf16.msra.mxu0 0
    %260 = vmatpush.bf16.msra.mxu0 0
    %261 = vmatpush.bf16.msra.mxu0 %v219
    %262 = vmatpush.bf16.msra.mxu0 %v218
    %263 = vmatpush.bf16.msra.mxu0 %v217
    %264 = vmatpush.bf16.msra.mxu0 %v216
    %265 = vmatmul.bf16.gmra.mxu0 %v233
    %v266 = vpop.f32.mrf.mxu0
    %v267 = vadd.f32 %v248, %v266
    %v268 = vpop.f32.mrf.mxu0
    %v269 = vadd.f32 %v250, %v268
    %270 = vmatmul.bf16.gmra.mxu0 %v236
    %v271 = vpop.f32.mrf.mxu0
    %v272 = vadd.f32 %v253, %v271
    %v273 = vpop.f32.mrf.mxu0
    %v274 = vadd.f32 %v255, %v273
    %275 = vdwg.mxu0
    %v276 = vld [vmem:[%s2] sm:$0x1]
    %v277 = vld [vmem:[#allocation2] sm:$0x1]
    %v278 = vadd.f32 %v267, %v269
    %v279 = vadd.f32 %v278, %v272
    %v280 = vadd.f32 %v279, %v274
    %v281 = vrot.slane %v280, 4
    %v282 = vadd.f32 %v280, %v281
    %v283 = vrot.slane %v282, 2
    %v284 = vadd.f32 %v282, %v283
    %v285 = vrot.slane %v284, 1
    %v286 = vadd.f32 %v284, %v285
    %v287 = vmul.f32 %v267, %v267
    %v288 = vmul.f32 %v269, %v269
    %v289 = vmul.f32 %v272, %v272
    %v290 = vmul.f32 %v274, %v274
    %v291 = vadd.f32 %v287, %v288
    %v292 = vadd.f32 %v291, %v289
    %v293 = vadd.f32 %v292, %v290
    %v294 = vrot.slane %v293, 4
    %v295 = vadd.f32 %v293, %v294
    %v296 = vrot.slane %v295, 2
    %v297 = vadd.f32 %v295, %v296
    %v298 = vrot.slane %v297, 1
    %v299 = vadd.f32 %v297, %v298
    %v300 = vsel %vm89, %v286, %v299
    %301 = vmatpush.msra.mxu0 %v79
    %302 = vmatpush.msra.mxu0 %v78
    %303 = vmatpush.msra.mxu0 %v77
    %304 = vmatpush.msra.mxu0 %v76
    %305 = vmatpush.msra.mxu0 %v75
    %306 = vmatpush.msra.mxu0 %v74
    %307 = vmatpush.msra.mxu0 %v73
    %308 = vmatpush.msra.mxu0 %v72
    %309 = vmatpush.msra.mxu0 %v71
    %310 = vmatpush.msra.mxu0 %v70
    %311 = vmatpush.msra.mxu0 %v69
    %312 = vmatpush.msra.mxu0 %v68
    %313 = vmatpush.msra.mxu0 %v67
    %314 = vmatpush.msra.mxu0 %v66
    %315 = vmatpush.msra.mxu0 %v65
    %316 = vmatpush.msra.mxu0 %v64
    %317 = vmatmul.f32.gmra.mxu0 %v300
    %v318 = vpop.f32.mrf.mxu0
    %v319 = vadd.f32 0.0, %v318
    %320 = vdwg.mxu0
    %v321 = vmul.f32 %v319, 0.001953125
    %v322 = vmul.f32 %v321, %v321
    %v324 = vrot.slane %v322, 7
    %v326 = vsub.f32 %v321, %v324
    %v327 = vmax.f32 %v326, 0.0
    %v328 = vadd.f32 %v327, 1e-05
    %v329 = vrsqrt.pop %v328
    %v330 = vmul.f32 %v329, %v328
    %v331 = vmul.f32 %v330, %v329
    %v332 = vmul.f32 0.5, %v331
    %v333 = vsub.f32 1.5, %v332
    %v334 = vmul.f32 %v329, %v333
    %vm335 = vweird.f32 %v328
    %vm336 = vweird.f32 %v329
    %vm337 = vmor %vm335, %vm336
    %v338 = vsel %vm337, %v329, %v334
    %340 = vst [vmem:[#allocation1] sm:$0xff] %v338
    %s341 = scalar_lea.vmem [#allocation1], 1
    %v342 = vld [vmem:[%s341] ss:$9 sm:$0xff]
    %v344 = vmul.f32 %v276, %v342
    %v345 = vmul.f32 %v321, %v344
    %v346 = vsub.f32 %v277, %v345
    %v348 = vperm.slane %v346, 0
    %v350 = vsel %vm89, %v344, %v348
    %vm351 = vcmask 64512
    %v353 = vsel %vm351, %v350, 0
    %355 = vmatpush.msra.mxu0 0.0
    %356 = vmatpush.msra.mxu0 0.0
    %357 = vmatpush.msra.mxu0 0.0
    %358 = vmatpush.msra.mxu0 0.0
    %359 = vmatpush.msra.mxu0 0.0
    %360 = vmatpush.msra.mxu0 0.0
    %361 = vmatpush.msra.mxu0 0.0
    %362 = vmatpush.msra.mxu0 0.0
    %363 = vmatpush.msra.mxu0 0.0
    %364 = vmatpush.msra.mxu0 0.0
    %365 = vmatpush.msra.mxu0 0.0
    %366 = vmatpush.msra.mxu0 0.0
    %367 = vmatpush.msra.mxu0 0.0
    %368 = vmatpush.msra.mxu0 0.0
    %369 = vmatpush.msra.mxu0 0.0
    %370 = vmatpush.msra.mxu0 %v80
    %371 = vmatmul.f32.gmra.mxu0 %v353
    %v372 = vpop.f32.mrf.mxu0
    %v373 = vadd.f32 0.0, %v372
    %374 = vdwg.mxu0
    %v375 = vperm.slane %v373, 0
    %v376 = vmul.f32 %v267, %v375
    %v377 = vmul.f32 %v269, %v375
    %v378 = vmul.f32 %v272, %v375
    %v379 = vmul.f32 %v274, %v375
    %v380 = vperm.slane %v373, 1
    %v381 = vadd.f32 %v376, %v380
    %v382 = vadd.f32 %v377, %v380
    %v383 = vadd.f32 %v378, %v380
    %v384 = vadd.f32 %v379, %v380
    %v385 = vmax.f32 %v381, 0.0
    %v386 = vmax.f32 %v382, 0.0
    %v387 = vmax.f32 %v383, 0.0
    %v388 = vmax.f32 %v384, 0.0
    %v393 = vrot.slane %v385, 7
    %v394 = vrot.slane %v386, 7
    %v395 = vsel %vm89, %v393, %v394
    %v396 = vrot.slane %v387, 7
    %v397 = vrot.slane %v388, 7
    %v398 = vsel %vm89, %v396, %v397
    %v403 = vsel %vm89, 0.0, %v393
    %v404 = vsel %vm89, 0.0, %v396
    %v405 = vrot.slane %v385, 1
    %v406 = vrot.slane %v386, 1
    %v407 = vsel %vm102, %v405, %v406
    %v408 = vrot.slane %v387, 1
    %v409 = vrot.slane %v388, 1
    %v410 = vsel %vm102, %v408, %v409
    %v415 = vsel %vm102, %v406, 0.0
    %v416 = vsel %vm102, %v409, 0.0
    %v417 = vpack.c.bf16 %v395, %v403
    %v418 = vpack.c.bf16 %v386, %v385
    %v419 = vpack.c.bf16 %v415, %v407
    %v420 = vpack.c.bf16 %v398, %v404
    %v421 = vpack.c.bf16 %v388, %v387
    %v422 = vpack.c.bf16 %v416, %v410
    %v423 = vld [vmem:[#allocation5] sm:$0xf]
    %v424 = vld [vmem:[#allocation5 + $0x4] sm:$0xf]
    %v425 = vld [vmem:[#allocation5 + $0x8] sm:$0xf]
    %v426 = vld [vmem:[#allocation5 + $0xc] sm:$0xf]
    %v427 = vld [vmem:[#allocation5 + $0x10] sm:$0xf]
    %v428 = vld [vmem:[#allocation5 + $0x14] sm:$0xf]
    %v429 = vld [vmem:[#allocation5 + $0x18] sm:$0xf]
    %v430 = vld [vmem:[#allocation5 + $0x1c] sm:$0xf]
    %v431 = vld [vmem:[#allocation5 + $0x20] sm:$0xf]
    %v432 = vld [vmem:[#allocation5 + $0x24] sm:$0xf]
    %v433 = vld [vmem:[#allocation5 + $0x28] sm:$0xf]
    %v434 = vld [vmem:[#allocation5 + $0x2c] sm:$0xf]
    %v435 = vld [vmem:[#allocation5 + $0x30] sm:$0xf]
    %v436 = vld [vmem:[#allocation5 + $0x34] sm:$0xf]
    %v437 = vld [vmem:[#allocation5 + $0x38] sm:$0xf]
    %v438 = vld [vmem:[#allocation5 + $0x3c] sm:$0xf]
    %v439 = vld [vmem:[#allocation5 + $0x40] sm:$0xf]
    %v440 = vld [vmem:[#allocation5 + $0x44] sm:$0xf]
    %v441 = vld [vmem:[#allocation5 + $0x48] sm:$0xf]
    %v442 = vld [vmem:[#allocation5 + $0x4c] sm:$0xf]
    %v443 = vld [vmem:[#allocation5 + $0x50] sm:$0xf]
    %v444 = vld [vmem:[#allocation5 + $0x54] sm:$0xf]
    %v445 = vld [vmem:[#allocation5 + $0x58] sm:$0xf]
    %v446 = vld [vmem:[#allocation5 + $0x5c] sm:$0xf]
    %v447 = vld [vmem:[#allocation5 + $0x60] sm:$0xf]
    %v448 = vld [vmem:[#allocation5 + $0x64] sm:$0xf]
    %v449 = vld [vmem:[#allocation5 + $0x68] sm:$0xf]
    %v450 = vld [vmem:[#allocation5 + $0x6c] sm:$0xf]
    %v451 = vld [vmem:[#allocation5 + $0x70] sm:$0xf]
    %v452 = vld [vmem:[#allocation5 + $0x74] sm:$0xf]
    %v453 = vld [vmem:[#allocation5 + $0x78] sm:$0xf]
    %v454 = vld [vmem:[#allocation5 + $0x7c] sm:$0xf]
    %v455 = vld [vmem:[#allocation5 + $0x80] sm:$0xf]
    %v456 = vld [vmem:[#allocation5 + $0x84] sm:$0xf]
    %v457 = vld [vmem:[#allocation5 + $0x88] sm:$0xf]
    %v458 = vld [vmem:[#allocation5 + $0x8c] sm:$0xf]
    %v459 = vld [vmem:[#allocation5 + $0x90] sm:$0xf]
    %v460 = vld [vmem:[#allocation5 + $0x94] sm:$0xf]
    %v461 = vld [vmem:[#allocation5 + $0x98] sm:$0xf]
    %v462 = vld [vmem:[#allocation5 + $0x9c] sm:$0xf]
    %v463 = vld [vmem:[#allocation5 + $0xa0] sm:$0xf]
    %v464 = vld [vmem:[#allocation5 + $0xa4] sm:$0xf]
    %v465 = vld [vmem:[#allocation5 + $0xa8] sm:$0xf]
    %v466 = vld [vmem:[#allocation5 + $0xac] sm:$0xf]
    %v467 = vld [vmem:[#allocation5 + $0xb0] sm:$0xf]
    %v468 = vld [vmem:[#allocation5 + $0xb4] sm:$0xf]
    %v469 = vld [vmem:[#allocation5 + $0xb8] sm:$0xf]
    %v470 = vld [vmem:[#allocation5 + $0xbc] sm:$0xf]
    %v519 = vunpack.c.l.b16 %v423
    %v520 = vunpack.c.l.b16 %v424
    %v521 = vunpack.c.l.b16 %v425
    %v522 = vunpack.c.l.b16 %v426
    %v523 = vunpack.c.l.b16 %v427
    %v524 = vunpack.c.l.b16 %v428
    %v525 = vunpack.c.l.b16 %v429
    %v526 = vunpack.c.l.b16 %v430
    %v527 = vunpack.c.l.b16 %v431
    %v528 = vunpack.c.l.b16 %v432
    %v529 = vunpack.c.l.b16 %v433
    %v530 = vunpack.c.l.b16 %v434
    %v531 = vunpack.c.l.b16 %v435
    %v532 = vunpack.c.l.b16 %v436
    %v533 = vunpack.c.l.b16 %v437
    %v534 = vunpack.c.l.b16 %v438
    %v535 = vunpack.c.l.b16 %v439
    %v536 = vunpack.c.l.b16 %v440
    %v537 = vunpack.c.l.b16 %v441
    %v538 = vunpack.c.l.b16 %v442
    %v539 = vunpack.c.l.b16 %v443
    %v540 = vunpack.c.l.b16 %v444
    %v541 = vunpack.c.l.b16 %v445
    %v542 = vunpack.c.l.b16 %v446
    %v543 = vunpack.c.l.b16 %v447
    %v544 = vunpack.c.l.b16 %v448
    %v545 = vunpack.c.l.b16 %v449
    %v546 = vunpack.c.l.b16 %v450
    %v547 = vunpack.c.l.b16 %v451
    %v548 = vunpack.c.l.b16 %v452
    %v549 = vunpack.c.l.b16 %v453
    %v550 = vunpack.c.l.b16 %v454
    %v551 = vunpack.c.l.b16 %v455
    %v552 = vunpack.c.l.b16 %v456
    %v553 = vunpack.c.l.b16 %v457
    %v554 = vunpack.c.l.b16 %v458
    %v555 = vunpack.c.l.b16 %v459
    %v556 = vunpack.c.l.b16 %v460
    %v557 = vunpack.c.l.b16 %v461
    %v558 = vunpack.c.l.b16 %v462
    %v559 = vunpack.c.l.b16 %v463
    %v560 = vunpack.c.l.b16 %v464
    %v561 = vunpack.c.l.b16 %v465
    %v562 = vunpack.c.l.b16 %v466
    %v563 = vunpack.c.l.b16 %v467
    %v564 = vunpack.c.l.b16 %v468
    %v565 = vunpack.c.l.b16 %v469
    %v566 = vunpack.c.l.b16 %v470
    %v567 = vpack.c.b16 %v520, %v519
    %v568 = vpack.c.b16 %v522, %v521
    %v569 = vpack.c.b16 %v524, %v523
    %v570 = vpack.c.b16 %v526, %v525
    %v571 = vpack.c.b16 %v528, %v527
    %v572 = vpack.c.b16 %v530, %v529
    %v573 = vpack.c.b16 %v532, %v531
    %v574 = vpack.c.b16 %v534, %v533
    %v575 = vpack.c.b16 %v536, %v535
    %v576 = vpack.c.b16 %v538, %v537
    %v577 = vpack.c.b16 %v540, %v539
    %v578 = vpack.c.b16 %v542, %v541
    %v579 = vpack.c.b16 %v544, %v543
    %v580 = vpack.c.b16 %v546, %v545
    %v581 = vpack.c.b16 %v548, %v547
    %v582 = vpack.c.b16 %v550, %v549
    %v583 = vpack.c.b16 %v552, %v551
    %v584 = vpack.c.b16 %v554, %v553
    %v585 = vpack.c.b16 %v556, %v555
    %v586 = vpack.c.b16 %v558, %v557
    %v587 = vpack.c.b16 %v560, %v559
    %v588 = vpack.c.b16 %v562, %v561
    %v589 = vpack.c.b16 %v564, %v563
    %v590 = vpack.c.b16 %v566, %v565
    %615 = vmatpush.bf16.msra.mxu0 %v574
    %616 = vmatpush.bf16.msra.mxu0 %v573
    %617 = vmatpush.bf16.msra.mxu0 %v572
    %618 = vmatpush.bf16.msra.mxu0 %v571
    %619 = vmatpush.bf16.msra.mxu0 %v570
    %620 = vmatpush.bf16.msra.mxu0 %v569
    %621 = vmatpush.bf16.msra.mxu0 %v568
    %622 = vmatpush.bf16.msra.mxu0 %v567
    %623 = vmatmul.bf16.gmra.mxu0 %v417
    %v624 = vpop.f32.mrf.mxu0
    %v625 = vadd.f32 0.0, %v624
    %v626 = vpop.f32.mrf.mxu0
    %v627 = vadd.f32 0.0, %v626
    %628 = vmatmul.bf16.gmra.mxu0 %v420
    %v629 = vpop.f32.mrf.mxu0
    %v630 = vadd.f32 0.0, %v629
    %v631 = vpop.f32.mrf.mxu0
    %v632 = vadd.f32 0.0, %v631
    %633 = vdwg.mxu0
    %634 = vmatpush.bf16.msra.mxu0 %v582
    %635 = vmatpush.bf16.msra.mxu0 %v581
    %636 = vmatpush.bf16.msra.mxu0 %v580
    %637 = vmatpush.bf16.msra.mxu0 %v579
    %638 = vmatpush.bf16.msra.mxu0 %v578
    %639 = vmatpush.bf16.msra.mxu0 %v577
    %640 = vmatpush.bf16.msra.mxu0 %v576
    %641 = vmatpush.bf16.msra.mxu0 %v575
    %642 = vmatmul.bf16.gmra.mxu0 %v418
    %v643 = vpop.f32.mrf.mxu0
    %v644 = vadd.f32 %v625, %v643
    %v645 = vpop.f32.mrf.mxu0
    %v646 = vadd.f32 %v627, %v645
    %647 = vmatmul.bf16.gmra.mxu0 %v421
    %v648 = vpop.f32.mrf.mxu0
    %v649 = vadd.f32 %v630, %v648
    %v650 = vpop.f32.mrf.mxu0
    %v651 = vadd.f32 %v632, %v650
    %652 = vdwg.mxu0
    %653 = vmatpush.bf16.msra.mxu0 %v590
    %654 = vmatpush.bf16.msra.mxu0 %v589
    %655 = vmatpush.bf16.msra.mxu0 %v588
    %656 = vmatpush.bf16.msra.mxu0 %v587
    %657 = vmatpush.bf16.msra.mxu0 %v586
    %658 = vmatpush.bf16.msra.mxu0 %v585
    %659 = vmatpush.bf16.msra.mxu0 %v584
    %660 = vmatpush.bf16.msra.mxu0 %v583
    %661 = vmatmul.bf16.gmra.mxu0 %v419
    %v662 = vpop.f32.mrf.mxu0
    %v663 = vadd.f32 %v644, %v662
    %v664 = vpop.f32.mrf.mxu0
    %v665 = vadd.f32 %v646, %v664
    %666 = vmatmul.bf16.gmra.mxu0 %v422
    %v667 = vpop.f32.mrf.mxu0
    %v668 = vadd.f32 %v649, %v667
    %v669 = vpop.f32.mrf.mxu0
    %v670 = vadd.f32 %v651, %v669
    %671 = vdwg.mxu0
    %v672 = vld [vmem:[%s5] sm:$0x1]
    %v673 = vld [vmem:[%s6] sm:$0x1]
    %v674 = vadd.f32 %v663, %v665
    %v675 = vadd.f32 %v674, %v668
    %v676 = vadd.f32 %v675, %v670
    %v677 = vrot.slane %v676, 4
    %v678 = vadd.f32 %v676, %v677
    %v679 = vrot.slane %v678, 2
    %v680 = vadd.f32 %v678, %v679
    %v681 = vrot.slane %v680, 1
    %v682 = vadd.f32 %v680, %v681
    %v683 = vmul.f32 %v663, %v663
    %v684 = vmul.f32 %v665, %v665
    %v685 = vmul.f32 %v668, %v668
    %v686 = vmul.f32 %v670, %v670
    %v687 = vadd.f32 %v683, %v684
    %v688 = vadd.f32 %v687, %v685
    %v689 = vadd.f32 %v688, %v686
    %v690 = vrot.slane %v689, 4
    %v691 = vadd.f32 %v689, %v690
    %v692 = vrot.slane %v691, 2
    %v693 = vadd.f32 %v691, %v692
    %v694 = vrot.slane %v693, 1
    %v695 = vadd.f32 %v693, %v694
    %v696 = vsel %vm89, %v682, %v695
    %697 = vmatpush.msra.mxu0 %v79
    %698 = vmatpush.msra.mxu0 %v78
    %699 = vmatpush.msra.mxu0 %v77
    %700 = vmatpush.msra.mxu0 %v76
    %701 = vmatpush.msra.mxu0 %v75
    %702 = vmatpush.msra.mxu0 %v74
    %703 = vmatpush.msra.mxu0 %v73
    %704 = vmatpush.msra.mxu0 %v72
    %705 = vmatpush.msra.mxu0 %v71
    %706 = vmatpush.msra.mxu0 %v70
    %707 = vmatpush.msra.mxu0 %v69
    %708 = vmatpush.msra.mxu0 %v68
    %709 = vmatpush.msra.mxu0 %v67
    %710 = vmatpush.msra.mxu0 %v66
    %711 = vmatpush.msra.mxu0 %v65
    %712 = vmatpush.msra.mxu0 %v64
    %713 = vmatmul.f32.gmra.mxu0 %v696
    %v714 = vpop.f32.mrf.mxu0
    %v715 = vadd.f32 0.0, %v714
    %716 = vdwg.mxu0
    %v717 = vmul.f32 %v715, 0.001953125
    %v718 = vmul.f32 %v717, %v717
    %v720 = vrot.slane %v718, 7
    %v722 = vsub.f32 %v717, %v720
    %v723 = vmax.f32 %v722, 0.0
    %v724 = vadd.f32 %v723, 1e-05
    %v725 = vrsqrt.pop %v724
    %v726 = vmul.f32 %v725, %v724
    %v727 = vmul.f32 %v726, %v725
    %v728 = vmul.f32 0.5, %v727
    %v729 = vsub.f32 1.5, %v728
    %v730 = vmul.f32 %v725, %v729
    %vm731 = vweird.f32 %v724
    %vm732 = vweird.f32 %v725
    %vm733 = vmor %vm731, %vm732
    %v734 = vsel %vm733, %v725, %v730
    %736 = vst [vmem:[#allocation1] sm:$0xff] %v734
    %s737 = scalar_lea.vmem [#allocation1], 1
    %v738 = vld [vmem:[%s737] ss:$9 sm:$0xff]
    %v740 = vmul.f32 %v672, %v738
    %v741 = vmul.f32 %v717, %v740
    %v742 = vsub.f32 %v673, %v741
    %v744 = vperm.slane %v742, 0
    %v746 = vsel %vm89, %v740, %v744
    %v748 = vsel %vm351, %v746, 0
    %750 = vmatpush.msra.mxu0 0.0
    %751 = vmatpush.msra.mxu0 0.0
    %752 = vmatpush.msra.mxu0 0.0
    %753 = vmatpush.msra.mxu0 0.0
    %754 = vmatpush.msra.mxu0 0.0
    %755 = vmatpush.msra.mxu0 0.0
    %756 = vmatpush.msra.mxu0 0.0
    %757 = vmatpush.msra.mxu0 0.0
    %758 = vmatpush.msra.mxu0 0.0
    %759 = vmatpush.msra.mxu0 0.0
    %760 = vmatpush.msra.mxu0 0.0
    %761 = vmatpush.msra.mxu0 0.0
    %762 = vmatpush.msra.mxu0 0.0
    %763 = vmatpush.msra.mxu0 0.0
    %764 = vmatpush.msra.mxu0 0.0
    %765 = vmatpush.msra.mxu0 %v80
    %766 = vmatmul.f32.gmra.mxu0 %v748
    %v767 = vpop.f32.mrf.mxu0
    %v768 = vadd.f32 0.0, %v767
    %769 = vdwg.mxu0
    %v770 = vperm.slane %v768, 0
    %v771 = vmul.f32 %v663, %v770
    %v772 = vmul.f32 %v665, %v770
    %v773 = vmul.f32 %v668, %v770
    %v774 = vmul.f32 %v670, %v770
    %v775 = vperm.slane %v768, 1
    %v776 = vadd.f32 %v771, %v775
    %v777 = vadd.f32 %v772, %v775
    %v778 = vadd.f32 %v773, %v775
    %v779 = vadd.f32 %v774, %v775
    %v780 = vmax.f32 %v776, 0.0
    %v781 = vmax.f32 %v777, 0.0
    %v782 = vmax.f32 %v778, 0.0
    %v783 = vmax.f32 %v779, 0.0
    %784 = vst [vmem:[#allocation7] sm:$0xff] %v780
    %785 = vst [vmem:[#allocation7 + $0x8] sm:$0xff] %v781
    %786 = vst [vmem:[#allocation7 + $0x10] sm:$0xff] %v782
    %787 = vst [vmem:[#allocation7 + $0x18] sm:$0xff] %v783
    // Predicated region
    $region46: #{tpu_custom_call.1} parent=1 // pred_check
      _
    $region47: #{tpu_custom_call.1} parent=1 // pred_check_branch
      %789 = sbr.rel (0) target = $region49
    $region48: #{tpu_custom_call.1} parent=1 // pred_region
      %791 = vsyncadd [#allocation4], 0
      %s792 = sshll.u32 [#allocation7], 4
      %s793 = int_to_ptr.vmem [resolvable:$true] %s792
      %s794 = sshll.u32 %s9, 4
      %s795 = int_to_ptr.hbm [resolvable:$true] %s794
      %800 = dma.vmem_to_hbm [thread:$0]  %s793, 512, %s795, [#allocation4], 128, 128, 8
    $region49: #{tpu_custom_call.1} parent=1 // pred_fallthru
      _
    // Predicated region
    $region50: #{tpu_custom_call.1} parent=1 // pred_check
      _
    $region51: #{tpu_custom_call.1} parent=1 // pred_check_branch
      %802 = sbr.rel (0) target = $region53
    $region52: #{tpu_custom_call.1} parent=1 // pred_region
      %804 = dma.done [#allocation4], 512
    $region53: #{tpu_custom_call.1} parent=1 // pred_fallthru
      _
    %805 = vsyncpa [#allocation3], 1
    %806 = vsyncpa [#allocation6], 1
    %807 = vsyncpa [#allocation4], 1

</llo_original>
